<compile_context>
chip_gen: v7x
topology: tpu7x:2x2x1
jax: 0.10.0
libtpu: 0.0.40
codegen_flags: <defaults>
</compile_context>

<pallas_src>
import jax
import jax.numpy as jnp
from jax.experimental import pallas as pl
from jax.experimental.pallas import tpu as pltpu


_NEG = -3.0e38  # mask sentinel; pool stays in f32 so this never overflows


# ----------------------------- Pallas kernel --------------------------------
def gnn_kernel(a_ref, xk_ref, xi_ref, w1_ref, b1_ref, w2_ref, b2_ref, mask_ref,
               out_ref, h1_ref, acc1_ref, acc2_ref):
    p = pl.program_id(0)        # phase: 0 = GCN layer 1, 1 = GCN layer 2 + pool
    i = pl.program_id(1)        # destination-node row tile
    k = pl.program_id(2)        # source-node (contraction) tile
    nk = pl.num_programs(2)
    tm = a_ref.shape[0]
    tk = a_ref.shape[1]

    # Initialize the resident pooled output once, at the very first grid step.
    @pl.when((p == 0) & (i == 0) & (k == 0))
    def _init_out():
        out_ref[...] = jnp.full(out_ref.shape, _NEG, dtype=out_ref.dtype)

    # ---- phase 0:  H1[i] = relu((A1[i,:] @ X) @ W1 + b1) -------------------
    @pl.when(p == 0)
    def _layer1():
        @pl.when(k == 0)
        def _():
            acc1_ref[...] = jnp.zeros_like(acc1_ref)

        # accumulate the NxN contraction on the narrow C_in dim (reassociated)
        acc1_ref[...] += jnp.dot(a_ref[...], xk_ref[...],
                                 preferred_element_type=jnp.float32)

        @pl.when(k == nk - 1)
        def _():
            h1 = jnp.dot(acc1_ref[...].astype(jnp.bfloat16), w1_ref[...],
                         preferred_element_type=jnp.float32) + b1_ref[...]
            h1 = jnp.maximum(h1, 0.0)
            h1_ref[pl.ds(pl.multiple_of(i * tm, tm), tm), :] = h1.astype(h1_ref.dtype)

    # ---- phase 1:  out = maxpool((A2[i,:] @ H1) @ W2 + b2 + X[i]) ----------
    @pl.when(p == 1)
    def _layer2():
        @pl.when(k == 0)
        def _():
            acc2_ref[...] = jnp.zeros_like(acc2_ref)

        h1_k = h1_ref[pl.ds(pl.multiple_of(k * tk, tk), tk), :].astype(jnp.bfloat16)
        acc2_ref[...] += jnp.dot(a_ref[...], h1_k,
                                 preferred_element_type=jnp.float32)

        @pl.when(k == nk - 1)
        def _():
            h2 = jnp.dot(acc2_ref[...].astype(jnp.bfloat16), w2_ref[...],
                         preferred_element_type=jnp.float32) + b2_ref[...]
            h2 = h2 + xi_ref[...]                       # residual, f32
            # vectorized per-graph masked max (mask is [G, TM, 1]; no transpose)
            m = mask_ref[...]
            masked = jnp.where(m > 0.0, h2[None, :, :], _NEG)   # [G, TM, C]
            out_ref[...] = jnp.maximum(out_ref[...], jnp.max(masked, axis=1))
            # NOTE: a graph with zero nodes would yield _NEG (torch's
            # global_max_pool would error); benign for this data.


# ------------------------------ wrapper --------------------------------------
def _nbytes(shape, dtype):
    n = 1
    for s in shape:
        n *= int(s)
    return n * jnp.dtype(dtype).itemsize


def gnn_forward(x, a1, a2, w1, b1, w2, b2, mask, *, row_tile=None, k_tile=None):
    n, c_in = x.shape
    hid = w1.shape[1]
    c_out = w2.shape[1]
    g = mask.shape[0]
    assert c_out == c_in, "residual `x += h` requires out_channels == in_channels"

    # Pad node count to a sublane multiple; padded adjacency rows/cols are zero
    # and padded nodes are excluded from the pool mask, so results are unchanged.
    n_pad = ((n + 7) // 8) * 8
    if n_pad != n:
        pad = n_pad - n
        x = jnp.pad(x, ((0, pad), (0, 0)))
        a1 = jnp.pad(a1, ((0, pad), (0, pad)))
        a2 = jnp.pad(a2, ((0, pad), (0, pad)))
        mask = jnp.pad(mask, ((0, 0), (0, pad)))

    # Tile selection: row tile must be a multiple of 8, k tile a multiple of 128
    # or the full extent.  (On v7x keep TM<=256 / TK<=1024 so double-buffered
    # bf16 adjacency tiles stay well inside the 64 MiB VMEM.)
    if row_tile is None:
        row_tile = next(t for t in (256, 128, 64, 32, 16, 8) if n_pad % t == 0)
    if k_tile is None:
        k_tile = next((t for t in (1024, 512, 256, 128) if n_pad % t == 0), n_pad)
    assert n_pad % row_tile == 0 and n_pad % k_tile == 0

    # Store H1 in bf16 when every dynamic sublane slice of the scratch is
    # 16-aligned (bf16 sublane packing); otherwise fall back to f32.
    h1_dtype = (jnp.bfloat16
                if (row_tile % 16 == 0 and k_tile % 16 == 0 and n_pad % 16 == 0)
                else jnp.float32)

    # bf16 at the boundary for everything that feeds the MXU; f32 copy of x is
    # kept for the residual; biases / mask stay f32.
    a_stk = jnp.stack([a1, a2]).astype(jnp.bfloat16)          # [2, N, N]
    x_bf = x.astype(jnp.bfloat16)
    w1_bf = w1.astype(jnp.bfloat16)
    w2_bf = w2.astype(jnp.bfloat16)
    b1_f = b1.astype(jnp.float32)
    b2_f = b2.astype(jnp.float32)
    mask3 = mask.astype(jnp.float32)[:, :, None]              # [G, N, 1]

    grid = (2, n_pad // row_tile, n_pad // k_tile)

    grid_spec = pltpu.PrefetchScalarGridSpec(
        num_scalar_prefetch=0,
        grid=grid,
        in_specs=[
            # stacked adjacency: phase selects A1 vs A2, streamed (i, k) tiles
            pl.BlockSpec((None, row_tile, k_tile), lambda p, i, k: (p, i, k)),
            # X (bf16) used only in phase 0: pin to block 0 during phase 1
            pl.BlockSpec((k_tile, c_in), lambda p, i, k: (k * (1 - p), 0)),
            # X (f32 residual) used only in phase 1: pin during phase 0
            pl.BlockSpec((row_tile, c_in), lambda p, i, k: (i * p, 0)),
            pl.BlockSpec((c_in, hid), lambda p, i, k: (0, 0)),        # W1
            pl.BlockSpec((1, hid), lambda p, i, k: (0, 0)),           # b1
            pl.BlockSpec((hid, c_out), lambda p, i, k: (0, 0)),       # W2
            pl.BlockSpec((1, c_out), lambda p, i, k: (0, 0)),         # b2
            # pool mask used only in phase 1: pin during phase 0
            pl.BlockSpec((g, row_tile, 1), lambda p, i, k: (0, i * p, 0)),
        ],
        out_specs=pl.BlockSpec((g, c_out), lambda p, i, k: (0, 0)),   # resident accumulator
        scratch_shapes=[
            pltpu.VMEM((n_pad, hid), h1_dtype),           # H1, persists across phases
            pltpu.VMEM((row_tile, c_in), jnp.float32),    # layer-1 contraction acc
            pltpu.VMEM((row_tile, hid), jnp.float32),     # layer-2 contraction acc
        ],
    )

    # Rough VMEM budget: double-buffered input blocks + scratch + output.
    block_bytes = (
        _nbytes((row_tile, k_tile), jnp.bfloat16)
        + _nbytes((k_tile, c_in), jnp.bfloat16)
        + _nbytes((row_tile, c_in), jnp.float32)
        + _nbytes((c_in, hid), jnp.bfloat16) + _nbytes((1, hid), jnp.float32)
        + _nbytes((hid, c_out), jnp.bfloat16) + _nbytes((1, c_out), jnp.float32)
        + _nbytes((g, row_tile, 1), jnp.float32)
    )
    scratch_bytes = (_nbytes((n_pad, hid), h1_dtype)
                     + _nbytes((row_tile, c_in), jnp.float32)
                     + _nbytes((row_tile, hid), jnp.float32))
    vmem_limit = max(32 * 1024 * 1024,
                     int(1.5 * (2 * block_bytes + scratch_bytes
                                + _nbytes((g, c_out), jnp.float32))))

    return pl.pallas_call(
        gnn_kernel,
        out_shape=jax.ShapeDtypeStruct((g, c_out), jnp.float32),
        grid_spec=grid_spec,
        compiler_params=pltpu.CompilerParams(
            # phase 1 needs all of H1 and the pooled output is carried across
            # row tiles, so every axis is a sequential dependency.
            dimension_semantics=("arbitrary", "arbitrary", "arbitrary"),
            vmem_limit_bytes=vmem_limit,
        ),
    )(a_stk, x_bf, x, w1_bf, b1_f, w2_bf, b2_f, mask3)


# ------------------------------ JAX glue -------------------------------------
def gcn_dense_adj(edge_index, edge_weight, num_nodes):
    """PyG GCNConv gcn_norm (add_self_loops=True) densified to [N, N]."""
    src, dst = edge_index[0], edge_index[1]
    loop = jnp.arange(num_nodes, dtype=src.dtype)
    src = jnp.concatenate([src, loop])
    dst = jnp.concatenate([dst, loop])
    w = jnp.concatenate([edge_weight, jnp.ones((num_nodes,), jnp.float32)])
    deg = jnp.zeros((num_nodes,), jnp.float32).at[dst].add(w)
    dinv = jnp.where(deg > 0, 1.0 / jnp.sqrt(deg), 0.0)
    norm = dinv[src] * w * dinv[dst]
    adj = jnp.zeros((num_nodes, num_nodes), jnp.float32).at[dst, src].add(norm)
    return adj


def normalize_weight(w):
    mx, mn = w.max(), w.min()
    return (mx - w) / (mx - mn)


def gnn_reference(x, a1, a2, w1, b1, w2, b2, mask):
    """Pure-JAX reference mirroring the kernel's bf16-MXU / f32-accumulate scheme."""
    xb, a1b, a2b = x.astype(jnp.bfloat16), a1.astype(jnp.bfloat16), a2.astype(jnp.bfloat16)
    w1b, w2b = w1.astype(jnp.bfloat16), w2.astype(jnp.bfloat16)
    s1 = jnp.dot(a1b, xb, preferred_element_type=jnp.float32)
    h1 = jnp.maximum(jnp.dot(s1.astype(jnp.bfloat16), w1b,
                             preferred_element_type=jnp.float32) + b1, 0.0)
    s2 = jnp.dot(a2b, h1.astype(jnp.bfloat16), preferred_element_type=jnp.float32)
    h2 = jnp.dot(s2.astype(jnp.bfloat16), w2b,
                 preferred_element_type=jnp.float32) + b2 + x
    masked = jnp.where(mask[:, :, None] > 0, h2[None, :, :], _NEG)
    return jnp.max(masked, axis=1)


# -------------------------------- main ----------------------------------------
if __name__ == "__main__":
    N, C_IN, HID, C_OUT, E, G = 16, 8, 32, 8, 40, 2   # residual => C_OUT == C_IN
    DROP_EDGE = 0.1

    key = jax.random.PRNGKey(0)
    ks = jax.random.split(key, 8)

    # Synthetic "Data": node features, edge list, edge attrs, batch assignment.
    x = jax.random.normal(ks[0], (N, C_IN), jnp.float32)
    src = jax.random.randint(ks[1], (E,), 0, N)
    dst = jax.random.randint(ks[2], (E,), 0, N)
    edge_index = jnp.stack([src, dst])                           # [2, E]
    edge_attr = jax.random.uniform(ks[3], (E, 2), jnp.float32, 0.1, 2.0)
    batch = jnp.concatenate([jnp.zeros(N // 2, jnp.int32),
                             jnp.ones(N - N // 2, jnp.int32)])   # 2 graphs

    # Deterministic parameter init (GCNConv weights/biases).
    w1 = jax.random.normal(ks[4], (C_IN, HID), jnp.float32) / jnp.sqrt(float(C_IN))
    b1 = jnp.zeros((1, HID), jnp.float32)
    w2 = jax.random.normal(ks[5], (HID, C_OUT), jnp.float32) / jnp.sqrt(float(HID))
    b2 = jnp.zeros((1, C_OUT), jnp.float32)
    # TODO(synk): self.bn (BatchNorm1d) and self.fc (Linear) are created in
    # __init__ but never used in forward(); intentionally omitted.

    # edge_weight = normalize(edge_attr[:, 1])
    edge_weight = normalize_weight(edge_attr[:, 1])

    # drop_edge_function — reference uses python random.shuffle; here a
    # deterministic permutation with a fixed key.
    num_keep = int((1.0 - DROP_EDGE) * E)
    keep = jnp.sort(jax.random.permutation(ks[6], E)[:num_keep])
    new_index = edge_index[:, keep]
    new_weight = edge_weight[keep]

    # Dense normalized adjacencies (conv1 uses dropped edges, conv2 full edges).
    a1 = gcn_dense_adj(new_index, new_weight, N)
    a2 = gcn_dense_adj(edge_index, edge_weight, N)

    # One-hot pool mask [G, N] from batch assignment.
    mask = (batch[None, :] == jnp.arange(G)[:, None]).astype(jnp.float32)

    ref = jax.block_until_ready(gnn_reference(x, a1, a2, w1, b1, w2, b2, mask))

    # Path 1: forced row_tile=8 exercises the multi-row-tile grid + f32 H1 path.
    out_a = jax.block_until_ready(
        gnn_forward(x, a1, a2, w1, b1, w2, b2, mask, row_tile=8))
    assert out_a.shape == (G, C_OUT) and out_a.dtype == jnp.float32
    assert jnp.allclose(out_a, ref, atol=5e-3, rtol=5e-3), (out_a, ref)

    # Path 2: default tiles (16-aligned here) exercises the bf16 H1 scratch path.
    out_b = jax.block_until_ready(gnn_forward(x, a1, a2, w1, b1, w2, b2, mask))
    assert out_b.shape == (G, C_OUT) and out_b.dtype == jnp.float32
    assert jnp.allclose(out_b, ref, atol=5e-3, rtol=5e-3), (out_b, ref)

    print("KERNEL_OK")
</pallas_src>

<mosaic_0001>
module attributes {stable_mosaic.version = 11 : i64} {
  func.func @gnn_kernel(%arg0: i32, %arg1: i32, %arg2: i32, %arg3: memref<1x8x16xbf16, #tpu.memory_space<vmem>>, %arg4: memref<16x8xbf16, #tpu.memory_space<vmem>>, %arg5: memref<8x8xf32, #tpu.memory_space<vmem>>, %arg6: memref<8x32xbf16, #tpu.memory_space<vmem>>, %arg7: memref<1x32xf32, #tpu.memory_space<vmem>>, %arg8: memref<32x8xbf16, #tpu.memory_space<vmem>>, %arg9: memref<1x8xf32, #tpu.memory_space<vmem>>, %arg10: memref<2x8x1xf32, #tpu.memory_space<vmem>>, %arg11: memref<2x8xf32, #tpu.memory_space<vmem>>, %arg12: memref<16x32xf32, #tpu.memory_space<vmem>>, %arg13: memref<8x8xf32, #tpu.memory_space<vmem>>, %arg14: memref<8x32xf32, #tpu.memory_space<vmem>>) attributes {dimension_semantics = [#tpu.dimension_semantics<arbitrary>, #tpu.dimension_semantics<arbitrary>, #tpu.dimension_semantics<arbitrary>], iteration_bounds = array<i64: 2, 2, 1>, scalar_prefetch = 0 : i64, scratch_operands = 3 : i64, tpu.core_type = #tpu.core_type<tc>, window_params = [{transform_indices = @transform_0, window_bounds = array<i64: 1, 8, 16>}, {transform_indices = @transform_1, window_bounds = array<i64: 16, 8>}, {transform_indices = @transform_2, window_bounds = array<i64: 8, 8>}, {pipeline_mode = #tpu.pipeline_mode<synchronous>, transform_indices = @transform_3, window_bounds = array<i64: 8, 32>}, {pipeline_mode = #tpu.pipeline_mode<synchronous>, transform_indices = @transform_4, window_bounds = array<i64: 1, 32>}, {pipeline_mode = #tpu.pipeline_mode<synchronous>, transform_indices = @transform_5, window_bounds = array<i64: 32, 8>}, {pipeline_mode = #tpu.pipeline_mode<synchronous>, transform_indices = @transform_6, window_bounds = array<i64: 1, 8>}, {transform_indices = @transform_7, window_bounds = array<i64: 2, 8, 1>}, {pipeline_mode = #tpu.pipeline_mode<synchronous>, transform_indices = @transform_8, window_bounds = array<i64: 2, 8>}]} {
    %c0_i32 = arith.constant 0 : i32
    %0 = arith.cmpi eq, %arg0, %c0_i32 : i32
    %c0_i32_0 = arith.constant 0 : i32
    %1 = arith.cmpi eq, %arg1, %c0_i32_0 : i32
    %2 = arith.andi %0, %1 : i1
    %c0_i32_1 = arith.constant 0 : i32
    %3 = arith.cmpi eq, %arg2, %c0_i32_1 : i32
    %4 = arith.andi %2, %3 : i1
    %5 = arith.extui %4 : i1 to i32
    %c0_i32_2 = arith.constant 0 : i32
    %6 = arith.cmpi ne, %5, %c0_i32_2 : i32
    scf.if %6 {
      %cst = arith.constant -3.000000e+38 : f32
      %13 = vector.broadcast %cst : f32 to vector<2x8xf32>
      %c0 = arith.constant 0 : index
      %c0_6 = arith.constant 0 : index
      %14 = vector.load %arg11[%c0, %c0_6] : memref<2x8xf32, #tpu.memory_space<vmem>>, vector<2x8xf32>
      tpu.vector_store %arg11[%c0, %c0_6], %13 {strides = array<i32>} : memref<2x8xf32, #tpu.memory_space<vmem>>, vector<2x8xf32>,
    } else {
    }
    %c0_i32_3 = arith.constant 0 : i32
    %7 = arith.cmpi eq, %arg0, %c0_i32_3 : i32
    %8 = arith.extui %7 : i1 to i32
    %c0_i32_4 = arith.constant 0 : i32
    %9 = arith.cmpi ne, %8, %c0_i32_4 : i32
    scf.if %9 {
      %c0_i32_6 = arith.constant 0 : i32
      %13 = arith.cmpi eq, %arg2, %c0_i32_6 : i32
      %14 = arith.extui %13 : i1 to i32
      %c0_i32_7 = arith.constant 0 : i32
      %15 = arith.cmpi ne, %14, %c0_i32_7 : i32
      scf.if %15 {
        %cst_18 = arith.constant 0.000000e+00 : f32
        %26 = vector.broadcast %cst_18 : f32 to vector<8x8xf32>
        %c0_19 = arith.constant 0 : index
        %c0_20 = arith.constant 0 : index
        %27 = vector.load %arg13[%c0_19, %c0_20] : memref<8x8xf32, #tpu.memory_space<vmem>>, vector<8x8xf32>
        tpu.vector_store %arg13[%c0_19, %c0_20], %26 {strides = array<i32>} : memref<8x8xf32, #tpu.memory_space<vmem>>, vector<8x8xf32>,
      } else {
      }
      %c0 = arith.constant 0 : index
      %c0_8 = arith.constant 0 : index
      %16 = vector.load %arg13[%c0, %c0_8] : memref<8x8xf32, #tpu.memory_space<vmem>>, vector<8x8xf32>
      %c0_9 = arith.constant 0 : index
      %c0_10 = arith.constant 0 : index
      %c0_11 = arith.constant 0 : index
      %17 = vector.load %arg3[%c0_9, %c0_10, %c0_11] : memref<1x8x16xbf16, #tpu.memory_space<vmem>>, vector<1x8x16xbf16>
      %18 = vector.shape_cast %17 : vector<1x8x16xbf16> to vector<8x16xbf16>
      %c0_12 = arith.constant 0 : index
      %c0_13 = arith.constant 0 : index
      %19 = vector.load %arg4[%c0_12, %c0_13] : memref<16x8xbf16, #tpu.memory_space<vmem>>, vector<16x8xbf16>
      %cst = arith.constant dense<0.000000e+00> : vector<8x8xf32>
      %20 = tpu.matmul %18, %19, %cst {dimension_numbers = #tpu.dot_dimension_numbers<[1], [0], [0], [1], [0, 0, 1, 1], [], []>} : vector<8x16xbf16>, vector<16x8xbf16>, vector<8x8xf32> -> vector<8x8xf32>
      %21 = arith.addf %16, %20 : vector<8x8xf32>
      %c0_14 = arith.constant 0 : index
      %c0_15 = arith.constant 0 : index
      %22 = vector.load %arg13[%c0_14, %c0_15] : memref<8x8xf32, #tpu.memory_space<vmem>>, vector<8x8xf32>
      tpu.vector_store %arg13[%c0_14, %c0_15], %21 {strides = array<i32>} : memref<8x8xf32, #tpu.memory_space<vmem>>, vector<8x8xf32>,
      %c0_i32_16 = arith.constant 0 : i32
      %23 = arith.cmpi eq, %arg2, %c0_i32_16 : i32
      %24 = arith.extui %23 : i1 to i32
      %c0_i32_17 = arith.constant 0 : i32
      %25 = arith.cmpi ne, %24, %c0_i32_17 : i32
      scf.if %25 {
        %c0_18 = arith.constant 0 : index
        %c0_19 = arith.constant 0 : index
        %26 = vector.load %arg13[%c0_18, %c0_19] : memref<8x8xf32, #tpu.memory_space<vmem>>, vector<8x8xf32>
        %27 = arith.truncf %26 : vector<8x8xf32> to vector<8x8xbf16>
        %c0_20 = arith.constant 0 : index
        %c0_21 = arith.constant 0 : index
        %28 = vector.load %arg6[%c0_20, %c0_21] : memref<8x32xbf16, #tpu.memory_space<vmem>>, vector<8x32xbf16>
        %cst_22 = arith.constant dense<0.000000e+00> : vector<8x32xf32>
        %29 = tpu.matmul %27, %28, %cst_22 {dimension_numbers = #tpu.dot_dimension_numbers<[1], [0], [0], [1], [0, 0, 1, 1], [], []>} : vector<8x8xbf16>, vector<8x32xbf16>, vector<8x32xf32> -> vector<8x32xf32>
        %c0_23 = arith.constant 0 : index
        %c0_24 = arith.constant 0 : index
        %30 = vector.load %arg7[%c0_23, %c0_24] : memref<1x32xf32, #tpu.memory_space<vmem>>, vector<1x32xf32>
        %31 = vector.broadcast %30 : vector<1x32xf32> to vector<8x32xf32>
        %32 = arith.addf %29, %31 : vector<8x32xf32>
        %cst_25 = arith.constant 0.000000e+00 : f32
        %33 = vector.broadcast %cst_25 : f32 to vector<8x32xf32>
        %34 = arith.maximumf %32, %33 : vector<8x32xf32>
        %c8_i32 = arith.constant 8 : i32
        %35 = arith.muli %arg1, %c8_i32 : i32
        %36 = tpu.assume_multiple %35, 8 : i32
        %37 = arith.index_cast %36 : i32 to index
        %c0_26 = arith.constant 0 : index
        %38 = vector.load %arg12[%37, %c0_26] : memref<16x32xf32, #tpu.memory_space<vmem>>, vector<8x32xf32>
        tpu.vector_store %arg12[%37, %c0_26], %34 {strides = array<i32>} : memref<16x32xf32, #tpu.memory_space<vmem>>, vector<8x32xf32>,
      } else {
      }
    } else {
    }
    %c1_i32 = arith.constant 1 : i32
    %10 = arith.cmpi eq, %arg0, %c1_i32 : i32
    %11 = arith.extui %10 : i1 to i32
    %c0_i32_5 = arith.constant 0 : i32
    %12 = arith.cmpi ne, %11, %c0_i32_5 : i32
    scf.if %12 {
      %c0_i32_6 = arith.constant 0 : i32
      %13 = arith.cmpi eq, %arg2, %c0_i32_6 : i32
      %14 = arith.extui %13 : i1 to i32
      %c0_i32_7 = arith.constant 0 : i32
      %15 = arith.cmpi ne, %14, %c0_i32_7 : i32
      scf.if %15 {
        %cst_17 = arith.constant 0.000000e+00 : f32
        %30 = vector.broadcast %cst_17 : f32 to vector<8x32xf32>
        %c0_18 = arith.constant 0 : index
        %c0_19 = arith.constant 0 : index
        %31 = vector.load %arg14[%c0_18, %c0_19] : memref<8x32xf32, #tpu.memory_space<vmem>>, vector<8x32xf32>
        tpu.vector_store %arg14[%c0_18, %c0_19], %30 {strides = array<i32>} : memref<8x32xf32, #tpu.memory_space<vmem>>, vector<8x32xf32>,
      } else {
      }
      %c16_i32 = arith.constant 16 : i32
      %16 = arith.muli %arg2, %c16_i32 : i32
      %17 = tpu.assume_multiple %16, 16 : i32
      %18 = arith.index_cast %17 : i32 to index
      %c0 = arith.constant 0 : index
      %19 = vector.load %arg12[%18, %c0] : memref<16x32xf32, #tpu.memory_space<vmem>>, vector<16x32xf32>
      %20 = arith.truncf %19 : vector<16x32xf32> to vector<16x32xbf16>
      %c0_8 = arith.constant 0 : index
      %c0_9 = arith.constant 0 : index
      %21 = vector.load %arg14[%c0_8, %c0_9] : memref<8x32xf32, #tpu.memory_space<vmem>>, vector<8x32xf32>
      %c0_10 = arith.constant 0 : index
      %c0_11 = arith.constant 0 : index
      %c0_12 = arith.constant 0 : index
      %22 = vector.load %arg3[%c0_10, %c0_11, %c0_12] : memref<1x8x16xbf16, #tpu.memory_space<vmem>>, vector<1x8x16xbf16>
      %23 = vector.shape_cast %22 : vector<1x8x16xbf16> to vector<8x16xbf16>
      %cst = arith.constant dense<0.000000e+00> : vector<8x32xf32>
      %24 = tpu.matmul %23, %20, %cst {dimension_numbers = #tpu.dot_dimension_numbers<[1], [0], [0], [1], [0, 0, 1, 1], [], []>} : vector<8x16xbf16>, vector<16x32xbf16>, vector<8x32xf32> -> vector<8x32xf32>
      %25 = arith.addf %21, %24 : vector<8x32xf32>
      %c0_13 = arith.constant 0 : index
      %c0_14 = arith.constant 0 : index
      %26 = vector.load %arg14[%c0_13, %c0_14] : memref<8x32xf32, #tpu.memory_space<vmem>>, vector<8x32xf32>
      tpu.vector_store %arg14[%c0_13, %c0_14], %25 {strides = array<i32>} : memref<8x32xf32, #tpu.memory_space<vmem>>, vector<8x32xf32>,
      %c0_i32_15 = arith.constant 0 : i32
      %27 = arith.cmpi eq, %arg2, %c0_i32_15 : i32
      %28 = arith.extui %27 : i1 to i32
      %c0_i32_16 = arith.constant 0 : i32
      %29 = arith.cmpi ne, %28, %c0_i32_16 : i32
      scf.if %29 {
        %c0_17 = arith.constant 0 : index
        %c0_18 = arith.constant 0 : index
        %30 = vector.load %arg14[%c0_17, %c0_18] : memref<8x32xf32, #tpu.memory_space<vmem>>, vector<8x32xf32>
        %31 = arith.truncf %30 : vector<8x32xf32> to vector<8x32xbf16>
        %c0_19 = arith.constant 0 : index
        %c0_20 = arith.constant 0 : index
        %32 = vector.load %arg8[%c0_19, %c0_20] : memref<32x8xbf16, #tpu.memory_space<vmem>>, vector<32x8xbf16>
        %cst_21 = arith.constant dense<0.000000e+00> : vector<8x8xf32>
        %33 = tpu.matmul %31, %32, %cst_21 {dimension_numbers = #tpu.dot_dimension_numbers<[1], [0], [0], [1], [0, 0, 1, 1], [], []>} : vector<8x32xbf16>, vector<32x8xbf16>, vector<8x8xf32> -> vector<8x8xf32>
        %c0_22 = arith.constant 0 : index
        %c0_23 = arith.constant 0 : index
        %34 = vector.load %arg9[%c0_22, %c0_23] : memref<1x8xf32, #tpu.memory_space<vmem>>, vector<1x8xf32>
        %35 = vector.broadcast %34 : vector<1x8xf32> to vector<8x8xf32>
        %36 = arith.addf %33, %35 : vector<8x8xf32>
        %c0_24 = arith.constant 0 : index
        %c0_25 = arith.constant 0 : index
        %37 = vector.load %arg5[%c0_24, %c0_25] : memref<8x8xf32, #tpu.memory_space<vmem>>, vector<8x8xf32>
        %38 = arith.addf %36, %37 : vector<8x8xf32>
        %c0_26 = arith.constant 0 : index
        %c0_27 = arith.constant 0 : index
        %c0_28 = arith.constant 0 : index
        %39 = vector.load %arg10[%c0_26, %c0_27, %c0_28] : memref<2x8x1xf32, #tpu.memory_space<vmem>>, vector<2x8x1xf32>
        %cst_29 = arith.constant 0.000000e+00 : f32
        %40 = vector.broadcast %cst_29 : f32 to vector<2x8x1xf32>
        %41 = arith.cmpf ogt, %39, %40 : vector<2x8x1xf32>
        %42 = vector.shape_cast %38 : vector<8x8xf32> to vector<1x8x8xf32>
        %cst_30 = arith.constant -3.000000e+38 : f32
        %43 = vector.shape_cast %41 : vector<2x8x1xi1> to vector<2x8x1xi1>
        %44 = vector.broadcast %43 : vector<2x8x1xi1> to vector<2x8x8xi1>
        %45 = vector.shape_cast %42 : vector<1x8x8xf32> to vector<1x8x8xf32>
        %46 = vector.broadcast %45 : vector<1x8x8xf32> to vector<2x8x8xf32>
        %47 = vector.broadcast %cst_30 : f32 to vector<2x8x8xf32>
        %48 = arith.select %44, %46, %47 : vector<2x8x8xi1>, vector<2x8x8xf32>
        %c0_31 = arith.constant 0 : index
        %c0_32 = arith.constant 0 : index
        %49 = vector.load %arg11[%c0_31, %c0_32] : memref<2x8xf32, #tpu.memory_space<vmem>>, vector<2x8xf32>
        %cst_33 = arith.constant dense<0xFF800000> : vector<2x8xf32>
        %50 = vector.multi_reduction <maximumf>, %48, %cst_33 [1] : vector<2x8x8xf32> to vector<2x8xf32>
        %51 = arith.maximumf %49, %50 : vector<2x8xf32>
        %c0_34 = arith.constant 0 : index
        %c0_35 = arith.constant 0 : index
        %52 = vector.load %arg11[%c0_34, %c0_35] : memref<2x8xf32, #tpu.memory_space<vmem>>, vector<2x8xf32>
        tpu.vector_store %arg11[%c0_34, %c0_35], %51 {strides = array<i32>} : memref<2x8xf32, #tpu.memory_space<vmem>>, vector<2x8xf32>,
      } else {
      }
    } else {
    }
    return
  }
  func.func @transform_0(%arg0: i32, %arg1: i32, %arg2: i32) -> (i32, i32, i32) {
    %c0_i32 = arith.constant 0 : i32
    return %arg0, %arg1, %arg2 : i32, i32, i32
  }
  func.func @transform_1(%arg0: i32, %arg1: i32, %arg2: i32) -> (i32, i32) {
    %c1_i32 = arith.constant 1 : i32
    %0 = arith.subi %c1_i32, %arg0 : i32
    %1 = arith.muli %arg2, %0 : i32
    %c0_i32 = arith.constant 0 : i32
    %c0_i32_0 = arith.constant 0 : i32
    return %1, %c0_i32 : i32, i32
  }
  func.func @transform_2(%arg0: i32, %arg1: i32, %arg2: i32) -> (i32, i32) {
    %0 = arith.muli %arg1, %arg0 : i32
    %c0_i32 = arith.constant 0 : i32
    %c0_i32_0 = arith.constant 0 : i32
    return %0, %c0_i32 : i32, i32
  }
  func.func @transform_3(%arg0: i32, %arg1: i32, %arg2: i32) -> (i32, i32) {
    %c0_i32 = arith.constant 0 : i32
    %c0_i32_0 = arith.constant 0 : i32
    %c0_i32_1 = arith.constant 0 : i32
    return %c0_i32, %c0_i32_0 : i32, i32
  }
  func.func @transform_4(%arg0: i32, %arg1: i32, %arg2: i32) -> (i32, i32) {
    %c0_i32 = arith.constant 0 : i32
    %c0_i32_0 = arith.constant 0 : i32
    %c0_i32_1 = arith.constant 0 : i32
    return %c0_i32, %c0_i32_0 : i32, i32
  }
  func.func @transform_5(%arg0: i32, %arg1: i32, %arg2: i32) -> (i32, i32) {
    %c0_i32 = arith.constant 0 : i32
    %c0_i32_0 = arith.constant 0 : i32
    %c0_i32_1 = arith.constant 0 : i32
    return %c0_i32, %c0_i32_0 : i32, i32
  }
  func.func @transform_6(%arg0: i32, %arg1: i32, %arg2: i32) -> (i32, i32) {
    %c0_i32 = arith.constant 0 : i32
    %c0_i32_0 = arith.constant 0 : i32
    %c0_i32_1 = arith.constant 0 : i32
    return %c0_i32, %c0_i32_0 : i32, i32
  }
  func.func @transform_7(%arg0: i32, %arg1: i32, %arg2: i32) -> (i32, i32, i32) {
    %0 = arith.muli %arg1, %arg0 : i32
    %c0_i32 = arith.constant 0 : i32
    %c0_i32_0 = arith.constant 0 : i32
    %c0_i32_1 = arith.constant 0 : i32
    return %c0_i32, %0, %c0_i32_0 : i32, i32, i32
  }
  func.func @transform_8(%arg0: i32, %arg1: i32, %arg2: i32) -> (i32, i32) {
    %c0_i32 = arith.constant 0 : i32
    %c0_i32_0 = arith.constant 0 : i32
    %c0_i32_1 = arith.constant 0 : i32
    return %c0_i32, %c0_i32_0 : i32, i32
  }
}

</mosaic_0001>

<llo_original>
// kernel: tpu_custom_call.1
$region0: #{tpu_custom_call.1}
  #allocation0 [shape = 'u32[]', space=smem, size = 0x4, offset = 0x4, fixed_abs, tag = 'smem constant byte address 0x4 - core index']
  #allocation1 [shape = 'u32[144,128]{1,0:T(1,128)}', space=vmem, size = 0x12000, scoped, tag = 'internal scratch']
  #allocation2 [shape = 'f32[16,32]{1,0:T(8,128)}', space=vmem, size = 0x2000, scoped, tag = 'scratch operand']
  #allocation3 [shape = 'f32[8,8]{1,0:T(8,128)}', space=vmem, size = 0x1000, scoped, tag = 'scratch operand']
  #allocation4 [shape = 'f32[8,32]{1,0:T(8,128)}', space=vmem, size = 0x1000, scoped, tag = 'scratch operand']
  %s0 = inlined_call_operand.vmem [shape: bf16[2,16,16], index: 0, kind: input, shape index: {}]
  %s1 = inlined_call_operand.vmem [shape: bf16[16,8], index: 1, kind: input, shape index: {}]
  %s2 = inlined_call_operand.vmem [shape: f32[16,8], index: 2, kind: input, shape index: {}]
  %s3 = inlined_call_operand.vmem [shape: bf16[8,32], index: 3, kind: input, shape index: {}]
  %s4 = inlined_call_operand.vmem [shape: f32[1,32], index: 4, kind: input, shape index: {}]
  %s5 = inlined_call_operand.vmem [shape: bf16[32,8], index: 5, kind: input, shape index: {}]
  %s6 = inlined_call_operand.vmem [shape: f32[1,8], index: 6, kind: input, shape index: {}]
  %s7 = inlined_call_operand.vmem [shape: f32[2,16,1], index: 7, kind: input, shape index: {}]
  %s8 = inlined_call_operand.hbm [shape: f32[2,8], index: 8, kind: output, shape index: {}]
  %s9 = sld [smem:[#allocation0]]
  $region131: #{tpu_custom_call.1} parent=0
    _
  %s11 = ssub.s32 1, %s9
  %s12 = scalar_select 0, %s11, %s9
  $region1: #{tpu_custom_call.1} parent=0
    #allocation5 [shape = 'u8[16384]{0}', space=vmem, size = 0x4000, scoped, tag = 'input window, operand 7']
    #allocation6 [shape = 'u8[1024]{0}', space=vmem, size = 0x400, scoped, tag = 'output window, operand 0, single buffered']
    #allocation7 [shape = 's32[2]{0}', space=sflag, size = 0x8, scoped, tag = 'scoped memory for tpu_custom_call.1']
    %13 = vsyncpa [#allocation7], 0
    loop: start=0, step=1, limit=6
    $region2: #{tpu_custom_call.1} parent=1 // loop_pre_header
      _
    $region3: #{tpu_custom_call.1} parent=1 // loop_header
      %s15 = sphi 0, %s19
      %p16 = scmp.ge.s32.totalorder %s15, 6
      %s22 = sphi 0, %s41
      %s23 = sphi 0, %s37
      %s24 = sphi 0, %s33
      %s25 = sphi 0, %s22
      %s26 = sphi 0, %s23
      %s27 = sphi 0, %s24
      %s28 = sphi 0, %s25
      %s29 = sphi 0, %s26
      %s30 = sphi 0, %s27
      %s48 = sphi 0, %s50
      %s51 = sphi 0, %s48
      %s52 = sphi 0, %s51
      %s68 = sphi 0, %s52
      %s78 = sphi 0, %s80
      %s81 = sphi 0, %s78
      %s82 = sphi 0, %s81
      %s98 = sphi 0, %s82
      %s106 = sphi 0, %s108
      %s109 = sphi 0, %s106
      %s110 = sphi 0, %s109
      %s126 = sphi 0, %s110
      %s130 = sphi 0, %s130
      %s132 = sphi 0, %s130
      %s133 = sphi 0, %s132
      %s147 = sphi 0, %s133
      %s151 = sphi 0, %s151
      %s153 = sphi 0, %s151
      %s154 = sphi 0, %s153
      %s168 = sphi 0, %s154
      %s172 = sphi 0, %s172
      %s174 = sphi 0, %s172
      %s175 = sphi 0, %s174
      %s189 = sphi 0, %s175
      %s193 = sphi 0, %s193
      %s195 = sphi 0, %s193
      %s196 = sphi 0, %s195
      %s210 = sphi 0, %s196
      %s218 = sphi 0, %s220
      %s221 = sphi 0, %s218
      %s222 = sphi 0, %s221
      %s238 = sphi 0, %s222
      %s242 = sphi 0, %s242
      %s244 = sphi 0, %s242
      %s245 = sphi 0, %s244
      %s259 = sphi 0, %s245
    $region4: #{tpu_custom_call.1} parent=1 // loop_header_branch
      %18 = sbr.rel (%p16) target = $region8
    $region5: #{tpu_custom_call.1} parent=1 // loop_body
      %s20 = ssub.s32 %s15, 1
      %s21 = ssub.s32 %s15, 2
      %s31 = sadd.s32 1, %s24
      %p32 = scmp.ge.s32.totalorder %s31, 1
      %s33 = scalar_select %p32, 0, %s31
      %s34 = sadd.s32 1, %s23
      %s35 = scalar_select %p32, %s34, %s23
      %p36 = scmp.ge.s32.totalorder %s35, 2
      %s37 = scalar_select %p36, 0, %s35
      %s38 = sadd.s32 1, %s22
      %s39 = scalar_select %p36, %s38, %s22
      %p40 = scmp.ge.s32.totalorder %s39, 2
      %s41 = scalar_select %p40, 0, %s39
      %s42 = ssub.s32 %s22, %s41
      %s43 = ssub.s32 %s23, %s37
      %s44 = sor.u32 %s42, %s43
      %s45 = ssub.s32 %s24, %s33
      %s46 = sor.u32 %s44, %s45
      %p47 = scmp.eq.s32.totalorder %s46, 0
      %s49 = sadd.s32 %s48, 1
      %s50 = scalar_select %p47, %s48, %s49
      %p53 = pneg %p47
      %p54 = scmp.eq.s32.totalorder %s15, 3
      %p55 = por %p53, %p54
      %p56 = scmp.ne.s32.totalorder %s48, %s51
      %p57 = scmp.eq.s32.totalorder %s15, 0
      %p58 = por %p56, %p57
      %p59 = scmp.ne.s32.totalorder %s48, %s51
      %p60 = scmp.eq.s32.totalorder %s20, 3
      %p61 = por %p59, %p60
      %p62 = scmp.ne.s32.totalorder %s51, %s52
      %p63 = scmp.eq.s32.totalorder %s20, 0
      %p64 = por %p62, %p63
      %p65 = scmp.ne.s32.totalorder %s51, %s52
      %p66 = scmp.eq.s32.totalorder %s21, 3
      %p67 = por %p65, %p66
      %p69 = scmp.ne.s32.totalorder %s52, %s68
      %p70 = scmp.eq.s32.totalorder %s21, 0
      %p71 = por %p69, %p70
      %s72 = ssub.s32 1, %s22
      %s73 = smul.u32 %s24, %s72
      %s74 = ssub.s32 1, %s41
      %s75 = smul.u32 %s33, %s74
      %s76 = ssub.s32 %s73, %s75
      %p77 = scmp.eq.s32.totalorder %s76, 0
      %s79 = sadd.s32 %s78, 1
      %s80 = scalar_select %p77, %s78, %s79
      %p83 = pneg %p77
      %p84 = scmp.eq.s32.totalorder %s15, 3
      %p85 = por %p83, %p84
      %p86 = scmp.ne.s32.totalorder %s78, %s81
      %p87 = scmp.eq.s32.totalorder %s15, 0
      %p88 = por %p86, %p87
      %p89 = scmp.ne.s32.totalorder %s78, %s81
      %p90 = scmp.eq.s32.totalorder %s20, 3
      %p91 = por %p89, %p90
      %p92 = scmp.ne.s32.totalorder %s81, %s82
      %p93 = scmp.eq.s32.totalorder %s20, 0
      %p94 = por %p92, %p93
      %p95 = scmp.ne.s32.totalorder %s81, %s82
      %p96 = scmp.eq.s32.totalorder %s21, 3
      %p97 = por %p95, %p96
      %p99 = scmp.ne.s32.totalorder %s82, %s98
      %p100 = scmp.eq.s32.totalorder %s21, 0
      %p101 = por %p99, %p100
      %s102 = smul.u32 %s23, %s22
      %s103 = smul.u32 %s37, %s41
      %s104 = ssub.s32 %s102, %s103
      %p105 = scmp.eq.s32.totalorder %s104, 0
      %s107 = sadd.s32 %s106, 1
      %s108 = scalar_select %p105, %s106, %s107
      %p111 = pneg %p105
      %p112 = scmp.eq.s32.totalorder %s15, 3
      %p113 = por %p111, %p112
      %p114 = scmp.ne.s32.totalorder %s106, %s109
      %p115 = scmp.eq.s32.totalorder %s15, 0
      %p116 = por %p114, %p115
      %p117 = scmp.ne.s32.totalorder %s106, %s109
      %p118 = scmp.eq.s32.totalorder %s20, 3
      %p119 = por %p117, %p118
      %p120 = scmp.ne.s32.totalorder %s109, %s110
      %p121 = scmp.eq.s32.totalorder %s20, 0
      %p122 = por %p120, %p121
      %p123 = scmp.ne.s32.totalorder %s109, %s110
      %p124 = scmp.eq.s32.totalorder %s21, 3
      %p125 = por %p123, %p124
      %p127 = scmp.ne.s32.totalorder %s110, %s126
      %p128 = scmp.eq.s32.totalorder %s21, 0
      %p129 = por %p127, %p128
      %s131 = sadd.s32 %s130, 1
      %p134 = scmp.eq.s32.totalorder %s15, 3
      %p135 = scmp.ne.s32.totalorder %s130, %s132
      %p136 = scmp.eq.s32.totalorder %s15, 0
      %p137 = por %p135, %p136
      %p138 = scmp.ne.s32.totalorder %s130, %s132
      %p139 = scmp.eq.s32.totalorder %s20, 3
      %p140 = por %p138, %p139
      %p141 = scmp.ne.s32.totalorder %s132, %s133
      %p142 = scmp.eq.s32.totalorder %s20, 0
      %p143 = por %p141, %p142
      %p144 = scmp.ne.s32.totalorder %s132, %s133
      %p145 = scmp.eq.s32.totalorder %s21, 3
      %p146 = por %p144, %p145
      %p148 = scmp.ne.s32.totalorder %s133, %s147
      %p149 = scmp.eq.s32.totalorder %s21, 0
      %p150 = por %p148, %p149
      %s152 = sadd.s32 %s151, 1
      %p155 = scmp.eq.s32.totalorder %s15, 3
      %p156 = scmp.ne.s32.totalorder %s151, %s153
      %p157 = scmp.eq.s32.totalorder %s15, 0
      %p158 = por %p156, %p157
      %p159 = scmp.ne.s32.totalorder %s151, %s153
      %p160 = scmp.eq.s32.totalorder %s20, 3
      %p161 = por %p159, %p160
      %p162 = scmp.ne.s32.totalorder %s153, %s154
      %p163 = scmp.eq.s32.totalorder %s20, 0
      %p164 = por %p162, %p163
      %p165 = scmp.ne.s32.totalorder %s153, %s154
      %p166 = scmp.eq.s32.totalorder %s21, 3
      %p167 = por %p165, %p166
      %p169 = scmp.ne.s32.totalorder %s154, %s168
      %p170 = scmp.eq.s32.totalorder %s21, 0
      %p171 = por %p169, %p170
      %s173 = sadd.s32 %s172, 1
      %p176 = scmp.eq.s32.totalorder %s15, 3
      %p177 = scmp.ne.s32.totalorder %s172, %s174
      %p178 = scmp.eq.s32.totalorder %s15, 0
      %p179 = por %p177, %p178
      %p180 = scmp.ne.s32.totalorder %s172, %s174
      %p181 = scmp.eq.s32.totalorder %s20, 3
      %p182 = por %p180, %p181
      %p183 = scmp.ne.s32.totalorder %s174, %s175
      %p184 = scmp.eq.s32.totalorder %s20, 0
      %p185 = por %p183, %p184
      %p186 = scmp.ne.s32.totalorder %s174, %s175
      %p187 = scmp.eq.s32.totalorder %s21, 3
      %p188 = por %p186, %p187
      %p190 = scmp.ne.s32.totalorder %s175, %s189
      %p191 = scmp.eq.s32.totalorder %s21, 0
      %p192 = por %p190, %p191
      %s194 = sadd.s32 %s193, 1
      %p197 = scmp.eq.s32.totalorder %s15, 3
      %p198 = scmp.ne.s32.totalorder %s193, %s195
      %p199 = scmp.eq.s32.totalorder %s15, 0
      %p200 = por %p198, %p199
      %p201 = scmp.ne.s32.totalorder %s193, %s195
      %p202 = scmp.eq.s32.totalorder %s20, 3
      %p203 = por %p201, %p202
      %p204 = scmp.ne.s32.totalorder %s195, %s196
      %p205 = scmp.eq.s32.totalorder %s20, 0
      %p206 = por %p204, %p205
      %p207 = scmp.ne.s32.totalorder %s195, %s196
      %p208 = scmp.eq.s32.totalorder %s21, 3
      %p209 = por %p207, %p208
      %p211 = scmp.ne.s32.totalorder %s196, %s210
      %p212 = scmp.eq.s32.totalorder %s21, 0
      %p213 = por %p211, %p212
      %s214 = smul.u32 %s23, %s22
      %s215 = smul.u32 %s37, %s41
      %s216 = ssub.s32 %s214, %s215
      %p217 = scmp.eq.s32.totalorder %s216, 0
      %s219 = sadd.s32 %s218, 1
      %s220 = scalar_select %p217, %s218, %s219
      %p223 = pneg %p217
      %p224 = scmp.eq.s32.totalorder %s15, 3
      %p225 = por %p223, %p224
      %p226 = scmp.ne.s32.totalorder %s218, %s221
      %p227 = scmp.eq.s32.totalorder %s15, 0
      %p228 = por %p226, %p227
      %p229 = scmp.ne.s32.totalorder %s218, %s221
      %p230 = scmp.eq.s32.totalorder %s20, 3
      %p231 = por %p229, %p230
      %p232 = scmp.ne.s32.totalorder %s221, %s222
      %p233 = scmp.eq.s32.totalorder %s20, 0
      %p234 = por %p232, %p233
      %p235 = scmp.ne.s32.totalorder %s221, %s222
      %p236 = scmp.eq.s32.totalorder %s21, 3
      %p237 = por %p235, %p236
      %p239 = scmp.ne.s32.totalorder %s222, %s238
      %p240 = scmp.eq.s32.totalorder %s21, 0
      %p241 = por %p239, %p240
      %s243 = sadd.s32 %s242, 1
      %p246 = scmp.eq.s32.totalorder %s15, 3
      %p247 = scmp.ne.s32.totalorder %s242, %s244
      %p248 = scmp.eq.s32.totalorder %s15, 0
      %p249 = por %p247, %p248
      %p250 = scmp.ne.s32.totalorder %s242, %s244
      %p251 = scmp.eq.s32.totalorder %s20, 3
      %p252 = por %p250, %p251
      %p253 = scmp.ne.s32.totalorder %s244, %s245
      %p254 = scmp.eq.s32.totalorder %s20, 0
      %p255 = por %p253, %p254
      %p256 = scmp.ne.s32.totalorder %s244, %s245
      %p257 = scmp.eq.s32.totalorder %s21, 3
      %p258 = por %p256, %p257
      %p260 = scmp.ne.s32.totalorder %s245, %s259
      %p261 = scmp.eq.s32.totalorder %s21, 0
      %p262 = por %p260, %p261
      %p263 = scmp.le.s32.totalorder 1, %s15
      %p264 = scmp.lt.s32.totalorder %s15, 5
      %p265 = pnand %p263, %p264
      %p266 = pneg %p265
      // Predicated region
      $region9: #{tpu_custom_call.1} parent=5 // pred_check
        _
      $region10: #{tpu_custom_call.1} parent=5 // pred_check_branch
        %268 = sbr.rel (%p265) target = $region12
      $region11: #{tpu_custom_call.1} parent=5 // pred_region
        %s269 = ssub.s32 %s15, 1
        // Predicated region
        $region13: #{tpu_custom_call.1} parent=11 // pred_check
          %p270 = pneg %p143
        $region14: #{tpu_custom_call.1} parent=11 // pred_check_branch
          %272 = sbr.rel (%p270) target = $region16
        $region15: #{tpu_custom_call.1} parent=11 // pred_region
          _
        $region16: #{tpu_custom_call.1} parent=11 // pred_fallthru
          _
        // Predicated region
        $region17: #{tpu_custom_call.1} parent=11 // pred_check
          %p273 = pneg %p164
        $region18: #{tpu_custom_call.1} parent=11 // pred_check_branch
          %275 = sbr.rel (%p273) target = $region20
        $region19: #{tpu_custom_call.1} parent=11 // pred_region
          _
        $region20: #{tpu_custom_call.1} parent=11 // pred_fallthru
          _
        // Predicated region
        $region21: #{tpu_custom_call.1} parent=11 // pred_check
          %p276 = pneg %p185
        $region22: #{tpu_custom_call.1} parent=11 // pred_check_branch
          %278 = sbr.rel (%p276) target = $region24
        $region23: #{tpu_custom_call.1} parent=11 // pred_region
          _
        $region24: #{tpu_custom_call.1} parent=11 // pred_fallthru
          _
        // Predicated region
        $region25: #{tpu_custom_call.1} parent=11 // pred_check
          %p279 = pneg %p206
        $region26: #{tpu_custom_call.1} parent=11 // pred_check_branch
          %281 = sbr.rel (%p279) target = $region28
        $region27: #{tpu_custom_call.1} parent=11 // pred_region
          _
        $region28: #{tpu_custom_call.1} parent=11 // pred_fallthru
          _
      $region12: #{tpu_custom_call.1} parent=5 // pred_fallthru
        _
      %p282 = scmp.lt.s32.totalorder %s15, 4
      // Predicated region
      $region29: #{tpu_custom_call.1} parent=5 // pred_check
        %p283 = pneg %p282
      $region30: #{tpu_custom_call.1} parent=5 // pred_check_branch
        %285 = sbr.rel (%p283) target = $region32
      $region31: #{tpu_custom_call.1} parent=5 // pred_region
        // Predicated region
        $region33: #{tpu_custom_call.1} parent=31 // pred_check
          %p286 = pneg %p58
        $region34: #{tpu_custom_call.1} parent=31 // pred_check_branch
          %288 = sbr.rel (%p286) target = $region36
        $region35: #{tpu_custom_call.1} parent=31 // pred_region
          %p289 = scmp.lt.s32.totalorder %s22, 1
          %s290 = scalar_select %p289, %s22, 1
          %p291 = scmp.lt.s32.totalorder %s23, 1
          %s292 = scalar_select %p291, %s23, 1
          %p293 = scmp.lt.s32.totalorder %s24, 0
          %s294 = scalar_select %p293, %s24, 0
          %s295 = sadd.s32 %s294, %s292
          %s296 = smul.addr %s290, 2
          %s297 = sadd.s32 %s295, %s296
          %s298 = smul.addr %s297, 4
          %s299 = scalar_lea.vmem %s0, %s298
        $region36: #{tpu_custom_call.1} parent=31 // pred_fallthru
          _
        // Predicated region
        $region37: #{tpu_custom_call.1} parent=31 // pred_check
          %p300 = pneg %p88
        $region38: #{tpu_custom_call.1} parent=31 // pred_check_branch
          %302 = sbr.rel (%p300) target = $region40
        $region39: #{tpu_custom_call.1} parent=31 // pred_region
          %s303 = ssub.s32 1, %s22
          %s304 = smul.u32 %s24, %s303
          %s305 = smul.u32 2, %s304
          %p306 = scmp.lt.s32.totalorder %s305, 1
          %s307 = scalar_select %p306, %s305, 1
          %s308 = smul.addr %s307, 4
          %s309 = scalar_lea.vmem %s1, %s308
          %s310 = ssub.s32 1, %s22
          %s311 = smul.u32 %s24, %s310
          %s312 = smul.u32 2, %s311
        $region40: #{tpu_custom_call.1} parent=31 // pred_fallthru
          _
        // Predicated region
        $region41: #{tpu_custom_call.1} parent=31 // pred_check
          %p313 = pneg %p116
        $region42: #{tpu_custom_call.1} parent=31 // pred_check_branch
          %315 = sbr.rel (%p313) target = $region44
        $region43: #{tpu_custom_call.1} parent=31 // pred_region
          %s316 = smul.u32 %s23, %s22
          %p317 = scmp.lt.s32.totalorder %s316, 1
          %s318 = scalar_select %p317, %s316, 1
          %s319 = smul.addr %s318, 8
          %s320 = scalar_lea.vmem %s2, %s319
          %s321 = smul.u32 %s23, %s22
        $region44: #{tpu_custom_call.1} parent=31 // pred_fallthru
          _
        // Predicated region
        $region45: #{tpu_custom_call.1} parent=31 // pred_check
          %p322 = pneg %p228
        $region46: #{tpu_custom_call.1} parent=31 // pred_check_branch
          %324 = sbr.rel (%p322) target = $region48
        $region47: #{tpu_custom_call.1} parent=31 // pred_region
          %s325 = sand.u32 %s218, 1
          %s326 = sand.u32 %s218, 1
          %s327 = smul.addr %s326, 16
          %s328 = scalar_lea.vmem [#allocation5], %s327
          %s329 = smul.u32 %s23, %s22
          %s330 = smul.addr %s329, 8
          %s331 = scalar_lea.vmem %s7, %s330
          // Predicated region
          $region49: #{tpu_custom_call.1} parent=47 // pred_check
            _
          $region50: #{tpu_custom_call.1} parent=47 // pred_check_branch
            %333 = sbr.rel (0) target = $region52
          $region51: #{tpu_custom_call.1} parent=47 // pred_region
            // Predicated region
            $region53: #{tpu_custom_call.1} parent=51 // pred_check
              _
            $region54: #{tpu_custom_call.1} parent=51 // pred_check_branch
              %335 = sbr.rel (0) target = $region56
            $region55: #{tpu_custom_call.1} parent=51 // pred_region
              // Predicated region
              $region68: #{tpu_custom_call.1} parent=55 // pred_check
                _
              $region69: #{tpu_custom_call.1} parent=55 // pred_check_branch
                %352 = sbr.rel (0) target = $region71
              $region70: #{tpu_custom_call.1} parent=55 // pred_region
                loop: start=0, step=1, limit=1
                $region72: #{tpu_custom_call.1} parent=70 // loop_pre_header
                  _
                $region73: #{tpu_custom_call.1} parent=70 // loop_header
                  %s354 = sphi 0, %s358
                  %p355 = scmp.ge.s32.totalorder %s354, 1
                  %s359 = sphi %s331, %s331
                  %s360 = sphi %s328, %s328
                $region74: #{tpu_custom_call.1} parent=70 // loop_header_branch
                  %357 = sbr.rel (%p355) target = $region78
                $region75: #{tpu_custom_call.1} parent=70 // loop_body
                  %v361 = vld [vmem:[%s359] sm:$0xff]
                  %362 = vst [vmem:[%s360] sm:$0xff] %v361
                  %v363 = vld [vmem:[%s359 + $0x10] sm:$0xff]
                  %364 = vst [vmem:[%s360 + $0x8] sm:$0xff] %v363
                $region76: #{tpu_custom_call.1} parent=70 // loop_footer
                  %s358 = sadd.s32 1, %s354
                $region77: #{tpu_custom_call.1} parent=70 // loop_footer_branch
                  %353 = sbr.rel target = $region73
                $region78: #{tpu_custom_call.1} parent=70 // loop_exit
                  _
              $region71: #{tpu_custom_call.1} parent=55 // pred_fallthru
                _
              // Predicated region
              $region79: #{tpu_custom_call.1} parent=55 // pred_check
                _
              $region80: #{tpu_custom_call.1} parent=55 // pred_check_branch
                %366 = sbr.rel target = $region82
              $region81: #{tpu_custom_call.1} parent=55 // pred_region
                _
              $region82: #{tpu_custom_call.1} parent=55 // pred_fallthru
                _
            $region56: #{tpu_custom_call.1} parent=51 // pred_fallthru
              _
            // Predicated region
            $region57: #{tpu_custom_call.1} parent=51 // pred_check
              _
            $region58: #{tpu_custom_call.1} parent=51 // pred_check_branch
              %337 = sbr.rel target = $region60
            $region59: #{tpu_custom_call.1} parent=51 // pred_region
              loop: start=0, step=1, limit=1
              $region61: #{tpu_custom_call.1} parent=59 // loop_pre_header
                _
              $region62: #{tpu_custom_call.1} parent=59 // loop_header
                %s340 = sphi 0, %s344
                %p341 = scmp.ge.s32.totalorder %s340, 1
                %s345 = sphi %s331, %s331
                %s346 = sphi %s328, %s328
              $region63: #{tpu_custom_call.1} parent=59 // loop_header_branch
                %343 = sbr.rel (%p341) target = $region67
              $region64: #{tpu_custom_call.1} parent=59 // loop_body
                %v347 = vld [vmem:[%s345] sm:$0xff]
                %348 = vst [vmem:[%s346] sm:$0xff] %v347
                %v349 = vld [vmem:[%s345 + $0x10] sm:$0xff]
                %350 = vst [vmem:[%s346 + $0x8] sm:$0xff] %v349
              $region65: #{tpu_custom_call.1} parent=59 // loop_footer
                %s344 = sadd.s32 1, %s340
              $region66: #{tpu_custom_call.1} parent=59 // loop_footer_branch
                %339 = sbr.rel target = $region62
              $region67: #{tpu_custom_call.1} parent=59 // loop_exit
                _
            $region60: #{tpu_custom_call.1} parent=51 // pred_fallthru
              _
          $region52: #{tpu_custom_call.1} parent=47 // pred_fallthru
            _
          %367 = vnop
        $region48: #{tpu_custom_call.1} parent=31 // pred_fallthru
          _
      $region32: #{tpu_custom_call.1} parent=5 // pred_fallthru
        _
      %p368 = scmp.le.s32.totalorder 1, %s15
      %p369 = scmp.lt.s32.totalorder %s15, 5
      %p370 = pnand %p368, %p369
      %p371 = pneg %p370
      // Predicated region
      $region83: #{tpu_custom_call.1} parent=5 // pred_check
        _
      $region84: #{tpu_custom_call.1} parent=5 // pred_check_branch
        %373 = sbr.rel (%p370) target = $region86
      $region85: #{tpu_custom_call.1} parent=5 // pred_region
        %s374 = ssub.s32 %s15, 1
        %s375 = sand.u32 %s221, 1
        %s376 = sand.u32 %s221, 1
        %s377 = smul.addr %s376, 16
        %s378 = scalar_lea.vmem [#allocation5], %s377
        // Predicated region
        $region87: #{tpu_custom_call.1} parent=85 // pred_check
          %p379 = pneg %p234
        $region88: #{tpu_custom_call.1} parent=85 // pred_check_branch
          %381 = sbr.rel (%p379) target = $region90
        $region89: #{tpu_custom_call.1} parent=85 // pred_region
          _
        $region90: #{tpu_custom_call.1} parent=85 // pred_fallthru
          _
        %p382 = scmp.lt.s32.totalorder %s25, 1
        %s383 = scalar_select %p382, %s25, 1
        %p384 = scmp.lt.s32.totalorder %s26, 1
        %s385 = scalar_select %p384, %s26, 1
        %p386 = scmp.lt.s32.totalorder %s27, 0
        %s387 = scalar_select %p386, %s27, 0
        %s388 = sadd.s32 %s387, %s385
        %s389 = smul.addr %s383, 2
        %s390 = sadd.s32 %s388, %s389
        %s391 = smul.addr %s390, 4
        %s392 = scalar_lea.vmem %s0, %s391
        %p393 = pneg %p64
        %p394 = pneg %p61
        %s395 = ssub.s32 1, %s25
        %s396 = smul.u32 %s27, %s395
        %s397 = smul.u32 2, %s396
        %p398 = scmp.lt.s32.totalorder %s397, 1
        %s399 = scalar_select %p398, %s397, 1
        %s400 = smul.addr %s399, 4
        %s401 = scalar_lea.vmem %s1, %s400
        %p402 = pneg %p94
        %p403 = pneg %p91
        %s404 = smul.u32 %s26, %s25
        %p405 = scmp.lt.s32.totalorder %s404, 1
        %s406 = scalar_select %p405, %s404, 1
        %s407 = smul.addr %s406, 8
        %s408 = scalar_lea.vmem %s2, %s407
        %p409 = pneg %p122
        %p410 = pneg %p119
        %p411 = pneg %p143
        %p412 = pneg %p140
        %p413 = pneg %p164
        %p414 = pneg %p161
        %p415 = pneg %p185
        %p416 = pneg %p182
        %p417 = pneg %p206
        %p418 = pneg %p203
        %s419 = sand.u32 %s221, 1
        %s420 = sand.u32 %s221, 1
        %s421 = smul.addr %s420, 16
        %s422 = scalar_lea.vmem [#allocation5], %s421
        %p423 = pneg %p234
        %p424 = pneg %p231
        %p425 = pneg %p255
        %p426 = pneg %p252
        %p427 = scmp.lt.s32.totalorder %s25, 1
        %s428 = scalar_select %p427, %s25, 1
        %p429 = scmp.lt.s32.totalorder %s26, 1
        %s430 = scalar_select %p429, %s26, 1
        %p431 = scmp.lt.s32.totalorder %s27, 0
        %s432 = scalar_select %p431, %s27, 0
        %s433 = sadd.s32 %s432, %s430
        %s434 = smul.addr %s428, 2
        %s435 = sadd.s32 %s433, %s434
        %s436 = smul.addr %s435, 4
        %s437 = scalar_lea.vmem %s0, %s436
        %s438 = ssub.s32 1, %s25
        %s439 = smul.u32 %s27, %s438
        %s440 = smul.u32 2, %s439
        %p441 = scmp.lt.s32.totalorder %s440, 1
        %s442 = scalar_select %p441, %s440, 1
        %s443 = smul.addr %s442, 4
        %s444 = scalar_lea.vmem %s1, %s443
        %s445 = ssub.s32 1, %s25
        %s446 = smul.u32 %s27, %s445
        %s447 = smul.u32 2, %s446
        %s448 = smul.u32 %s26, %s25
        %p449 = scmp.lt.s32.totalorder %s448, 1
        %s450 = scalar_select %p449, %s448, 1
        %s451 = smul.addr %s450, 8
        %s452 = scalar_lea.vmem %s2, %s451
        %s453 = smul.u32 %s26, %s25
        %s454 = smul.u32 %s26, %s25
        %p456 = scmp.eq.s32.totalorder %s25, 0
        %p457 = scmp.eq.s32.totalorder %s26, 0
        %p458 = pnand %p456, %p457
        %p459 = pneg %p458
        %p460 = scmp.eq.s32.totalorder %s27, 0
        %p461 = pnand %p459, %p460
        %p462 = pneg %p461
        // Predicated region
        $region91: #{tpu_custom_call.1} parent=85 // pred_check
          _
        $region92: #{tpu_custom_call.1} parent=85 // pred_check_branch
          %464 = sbr.rel (%p461) target = $region94
        $region93: #{tpu_custom_call.1} parent=85 // pred_region
          %vm465 = vcmask 58368
          %466 = vst.msk [vmem:[#allocation6] sm:$0x3] %vm465, -3e+38
        $region94: #{tpu_custom_call.1} parent=85 // pred_fallthru
          _
        // Predicated region
        $region95: #{tpu_custom_call.1} parent=85 // pred_check
          %p467 = pneg %p456
        $region96: #{tpu_custom_call.1} parent=85 // pred_check_branch
          %469 = sbr.rel (%p467) target = $region98
        $region97: #{tpu_custom_call.1} parent=85 // pred_region
          // Predicated region
          $region99: #{tpu_custom_call.1} parent=97 // pred_check
            %p470 = pneg %p460
          $region100: #{tpu_custom_call.1} parent=97 // pred_check_branch
            %472 = sbr.rel (%p470) target = $region102
          $region101: #{tpu_custom_call.1} parent=97 // pred_region
            %vm473 = vcmask 64512
            %474 = vst.msk [vmem:[#allocation3] sm:$0xff] %vm473, 0.0
          $region102: #{tpu_custom_call.1} parent=97 // pred_fallthru
            _
          %v475 = vld [vmem:[#allocation3] sm:$0xff]
          %v476 = vld [vmem:[%s437] sm:$0xf]
          %v477 = vld [vmem:[%s444] sm:$0xf]
          %v478 = vld [vmem:[%s444 + $0x4] sm:$0xf]
          %v481 = vunpack.c.l.b16 %v477
          %v482 = vunpack.c.l.b16 %v478
          %v483 = vpack.c.b16 %v482, %v481
          %vm485 = vcmask 130048
          %v487 = vsel %vm485, %v476, 0
          %489 = vmatprep.subr.bf16.mxu0 0
          %490 = vmatpush1.bf16.msra.mxu0 %v483
          %491 = vmatprep.subr.bf16.mxu0 0
          %492 = vmatpush1.bf16.msra.mxu0 0
          %493 = vmatprep.subr.bf16.mxu0 0
          %494 = vmatpush1.bf16.msra.mxu0 0
          %495 = vmatprep.subr.bf16.mxu0 0
          %496 = vmatpush1.bf16.msra.mxu0 0
          %497 = vmatprep.subr.bf16.mxu0 0
          %498 = vmatpush1.bf16.msra.mxu0 0
          %499 = vmatprep.subr.bf16.mxu0 0
          %500 = vmatpush1.bf16.msra.mxu0 0
          %501 = vmatprep.subr.bf16.mxu0 0
          %502 = vmatpush1.bf16.msra.mxu0 0
          %503 = vmatprep.subr.bf16.mxu0 0
          %504 = vmatpush1.bf16.msra.mxu0 0
          %505 = vmatprep.subr.bf16.mxu0 0
          %506 = vmatpush1.bf16.msra.mxu0 0
          %507 = vmatprep.subr.bf16.mxu0 0
          %508 = vmatpush1.bf16.msra.mxu0 0
          %509 = vmatprep.subr.bf16.mxu0 0
          %510 = vmatpush1.bf16.msra.mxu0 0
          %511 = vmatprep.subr.bf16.mxu0 0
          %512 = vmatpush1.bf16.msra.mxu0 0
          %513 = vmatprep.subr.bf16.mxu0 0
          %514 = vmatpush1.bf16.msra.mxu0 0
          %515 = vmatprep.subr.bf16.mxu0 0
          %516 = vmatpush1.bf16.msra.mxu0 0
          %517 = vmatprep.subr.bf16.mxu0 0
          %518 = vmatpush1.bf16.msra.mxu0 0
          %519 = vmatprep.subr.bf16.mxu0 0
          %520 = vmatpush1.bf16.msra.mxu0 0
          %521 = vmatprep.mubr.bf16.mxu0 0
          %522 = vmatmul.mubr.bf16.gmra.mrb[0].mxu0 %v487
          %v523 = vpop.f32.mrb[0].mxu0
          %v524 = vadd.f32 0.0, %v523
          %v525 = vpop.f32.mrb[0].mxu0
          %v526 = vpop.f32.mrb[0].mxu0
          %v527 = vpop.f32.mrb[0].mxu0
          %528 = vdwg.mxu0
          %v529 = vadd.f32 %v475, %v524
          %vm530 = vcmask 64512
          %531 = vst.msk [vmem:[#allocation3] sm:$0xff] %vm530, %v529
          // Predicated region
          $region103: #{tpu_custom_call.1} parent=97 // pred_check
            %p532 = pneg %p460
          $region104: #{tpu_custom_call.1} parent=97 // pred_check_branch
            %534 = sbr.rel (%p532) target = $region106
          $region105: #{tpu_custom_call.1} parent=97 // pred_region
            %v535 = vld [vmem:[#allocation3] sm:$0xff]
            %v536 = vpack.c.bf16 %v535, %v535
            %v537 = vld [vmem:[%s3] sm:$0xf]
            %v538 = vld [vmem:[%s4] sm:$0x1]
            %v540 = vlaneseq
            %v541 = vshrl.u32 %v540, 7
            %v542 = vsub.s32 0, %v541
            %v543 = vrot.slane %v538, %v542
            %v546 = vsel %vm530, %v536, 0
            %vm548 = vcmask 1043456
            %v550 = vsel %vm548, %v537, 0
            %552 = vmatprep.subr.bf16.mxu0 0
            %553 = vmatpush1.bf16.msra.mxu0 %v550
            %554 = vmatprep.subr.bf16.mxu0 0
            %555 = vmatpush1.bf16.msra.mxu0 0
            %556 = vmatprep.subr.bf16.mxu0 0
            %557 = vmatpush1.bf16.msra.mxu0 0
            %558 = vmatprep.subr.bf16.mxu0 0
            %559 = vmatpush1.bf16.msra.mxu0 0
            %560 = vmatprep.subr.bf16.mxu0 0
            %561 = vmatpush1.bf16.msra.mxu0 0
            %562 = vmatprep.subr.bf16.mxu0 0
            %563 = vmatpush1.bf16.msra.mxu0 0
            %564 = vmatprep.subr.bf16.mxu0 0
            %565 = vmatpush1.bf16.msra.mxu0 0
            %566 = vmatprep.subr.bf16.mxu0 0
            %567 = vmatpush1.bf16.msra.mxu0 0
            %568 = vmatprep.subr.bf16.mxu0 0
            %569 = vmatpush1.bf16.msra.mxu0 0
            %570 = vmatprep.subr.bf16.mxu0 0
            %571 = vmatpush1.bf16.msra.mxu0 0
            %572 = vmatprep.subr.bf16.mxu0 0
            %573 = vmatpush1.bf16.msra.mxu0 0
            %574 = vmatprep.subr.bf16.mxu0 0
            %575 = vmatpush1.bf16.msra.mxu0 0
            %576 = vmatprep.subr.bf16.mxu0 0
            %577 = vmatpush1.bf16.msra.mxu0 0
            %578 = vmatprep.subr.bf16.mxu0 0
            %579 = vmatpush1.bf16.msra.mxu0 0
            %580 = vmatprep.subr.bf16.mxu0 0
            %581 = vmatpush1.bf16.msra.mxu0 0
            %582 = vmatprep.subr.bf16.mxu0 0
            %583 = vmatpush1.bf16.msra.mxu0 0
            %584 = vmatprep.mubr.bf16.mxu0 0
            %585 = vmatmul.mubr.bf16.gmra.mrb[0].mxu0 %v546
            %v586 = vpop.f32.mrb[0].mxu0
            %v587 = vadd.f32 %v543, %v586
            %v588 = vpop.f32.mrb[0].mxu0
            %v589 = vpop.f32.mrb[0].mxu0
            %v590 = vpop.f32.mrb[0].mxu0
            %591 = vdwg.mxu0
            %v592 = vmax.f32 %v587, 0.0
            %s593 = smul.u32 %s26, 8
            %s594 = scalar_lea.vmem [#allocation2], %s593
            %vm595 = vcmask 261120
            %596 = vst.msk [vmem:[%s594] sm:$0xff] %vm595, %v592
          $region106: #{tpu_custom_call.1} parent=97 // pred_fallthru
            _
        $region98: #{tpu_custom_call.1} parent=85 // pred_fallthru
          _
        %p597 = scmp.eq.s32.totalorder %s25, 1
        // Predicated region
        $region107: #{tpu_custom_call.1} parent=85 // pred_check
          %p598 = pneg %p597
        $region108: #{tpu_custom_call.1} parent=85 // pred_check_branch
          %600 = sbr.rel (%p598) target = $region110
        $region109: #{tpu_custom_call.1} parent=85 // pred_region
          // Predicated region
          $region111: #{tpu_custom_call.1} parent=109 // pred_check
            %p601 = pneg %p460
          $region112: #{tpu_custom_call.1} parent=109 // pred_check_branch
            %603 = sbr.rel (%p601) target = $region114
          $region113: #{tpu_custom_call.1} parent=109 // pred_region
            %vm604 = vcmask 261120
            %605 = vst.msk [vmem:[#allocation4] sm:$0xff] %vm604, 0.0
          $region114: #{tpu_custom_call.1} parent=109 // pred_fallthru
            _
          %s606 = smul.u32 %s27, 16
          %s607 = scalar_lea.vmem [#allocation2], %s606
          %v608 = vld [vmem:[%s607] sm:$0xff]
          %v609 = vld [vmem:[%s607 + $0x8] sm:$0xff]
          %v610 = vpack.c.bf16 %v609, %v608
          %v611 = vld [vmem:[#allocation4] sm:$0xff]
          %v612 = vld [vmem:[%s437] sm:$0xf]
          %vm613 = vcmask 130048
          %v615 = vsel %vm613, %v612, 0
          %617 = vmatprep.subr.bf16.mxu0 0
          %618 = vmatpush1.bf16.msra.mxu0 %v610
          %619 = vmatprep.subr.bf16.mxu0 0
          %620 = vmatpush1.bf16.msra.mxu0 0
          %621 = vmatprep.subr.bf16.mxu0 0
          %622 = vmatpush1.bf16.msra.mxu0 0
          %623 = vmatprep.subr.bf16.mxu0 0
          %624 = vmatpush1.bf16.msra.mxu0 0
          %625 = vmatprep.subr.bf16.mxu0 0
          %626 = vmatpush1.bf16.msra.mxu0 0
          %627 = vmatprep.subr.bf16.mxu0 0
          %628 = vmatpush1.bf16.msra.mxu0 0
          %629 = vmatprep.subr.bf16.mxu0 0
          %630 = vmatpush1.bf16.msra.mxu0 0
          %631 = vmatprep.subr.bf16.mxu0 0
          %632 = vmatpush1.bf16.msra.mxu0 0
          %633 = vmatprep.subr.bf16.mxu0 0
          %634 = vmatpush1.bf16.msra.mxu0 0
          %635 = vmatprep.subr.bf16.mxu0 0
          %636 = vmatpush1.bf16.msra.mxu0 0
          %637 = vmatprep.subr.bf16.mxu0 0
          %638 = vmatpush1.bf16.msra.mxu0 0
          %639 = vmatprep.subr.bf16.mxu0 0
          %640 = vmatpush1.bf16.msra.mxu0 0
          %641 = vmatprep.subr.bf16.mxu0 0
          %642 = vmatpush1.bf16.msra.mxu0 0
          %643 = vmatprep.subr.bf16.mxu0 0
          %644 = vmatpush1.bf16.msra.mxu0 0
          %645 = vmatprep.subr.bf16.mxu0 0
          %646 = vmatpush1.bf16.msra.mxu0 0
          %647 = vmatprep.subr.bf16.mxu0 0
          %648 = vmatpush1.bf16.msra.mxu0 0
          %649 = vmatprep.mubr.bf16.mxu0 0
          %650 = vmatmul.mubr.bf16.gmra.mrb[0].mxu0 %v615
          %v651 = vpop.f32.mrb[0].mxu0
          %v652 = vadd.f32 0.0, %v651
          %v653 = vpop.f32.mrb[0].mxu0
          %v654 = vpop.f32.mrb[0].mxu0
          %v655 = vpop.f32.mrb[0].mxu0
          %656 = vdwg.mxu0
          %v657 = vadd.f32 %v611, %v652
          %vm658 = vcmask 261120
          %659 = vst.msk [vmem:[#allocation4] sm:$0xff] %vm658, %v657
          // Predicated region
          $region115: #{tpu_custom_call.1} parent=109 // pred_check
            %p660 = pneg %p460
          $region116: #{tpu_custom_call.1} parent=109 // pred_check_branch
            %662 = sbr.rel (%p660) target = $region118
          $region117: #{tpu_custom_call.1} parent=109 // pred_region
            %v663 = vld [vmem:[#allocation4] sm:$0xff]
            %v664 = vpack.c.bf16 %v663, %v663
            %v665 = vld [vmem:[%s5] sm:$0xf]
            %v666 = vld [vmem:[%s5 + $0x4] sm:$0xf]
            %v667 = vld [vmem:[%s5 + $0x8] sm:$0xf]
            %v668 = vld [vmem:[%s5 + $0xc] sm:$0xf]
            %v669 = vld [vmem:[%s6] sm:$0x1]
            %v671 = vlaneseq
            %v672 = vshrl.u32 %v671, 7
            %v673 = vsub.s32 0, %v672
            %v674 = vrot.slane %v669, %v673
            %v680 = vunpack.c.l.b16 %v665
            %v681 = vunpack.c.l.b16 %v666
            %v682 = vunpack.c.l.b16 %v667
            %v683 = vunpack.c.l.b16 %v668
            %v684 = vpack.c.b16 %v681, %v680
            %v685 = vpack.c.b16 %v683, %v682
            %v689 = vsel %vm658, %v664, 0
            %691 = vmatprep.subr.bf16.mxu0 0
            %692 = vmatpush1.bf16.msra.mxu0 %v684
            %693 = vmatprep.subr.bf16.mxu0 0
            %694 = vmatpush1.bf16.msra.mxu0 %v685
            %695 = vmatprep.subr.bf16.mxu0 0
            %696 = vmatpush1.bf16.msra.mxu0 0
            %697 = vmatprep.subr.bf16.mxu0 0
            %698 = vmatpush1.bf16.msra.mxu0 0
            %699 = vmatprep.subr.bf16.mxu0 0
            %700 = vmatpush1.bf16.msra.mxu0 0
            %701 = vmatprep.subr.bf16.mxu0 0
            %702 = vmatpush1.bf16.msra.mxu0 0
            %703 = vmatprep.subr.bf16.mxu0 0
            %704 = vmatpush1.bf16.msra.mxu0 0
            %705 = vmatprep.subr.bf16.mxu0 0
            %706 = vmatpush1.bf16.msra.mxu0 0
            %707 = vmatprep.subr.bf16.mxu0 0
            %708 = vmatpush1.bf16.msra.mxu0 0
            %709 = vmatprep.subr.bf16.mxu0 0
            %710 = vmatpush1.bf16.msra.mxu0 0
            %711 = vmatprep.subr.bf16.mxu0 0
            %712 = vmatpush1.bf16.msra.mxu0 0
            %713 = vmatprep.subr.bf16.mxu0 0
            %714 = vmatpush1.bf16.msra.mxu0 0
            %715 = vmatprep.subr.bf16.mxu0 0
            %716 = vmatpush1.bf16.msra.mxu0 0
            %717 = vmatprep.subr.bf16.mxu0 0
            %718 = vmatpush1.bf16.msra.mxu0 0
            %719 = vmatprep.subr.bf16.mxu0 0
            %720 = vmatpush1.bf16.msra.mxu0 0
            %721 = vmatprep.subr.bf16.mxu0 0
            %722 = vmatpush1.bf16.msra.mxu0 0
            %723 = vmatprep.mubr.bf16.mxu0 0
            %724 = vmatmul.mubr.bf16.gmra.mrb[0].mxu0 %v689
            %v725 = vpop.f32.mrb[0].mxu0
            %v726 = vadd.f32 %v674, %v725
            %v727 = vpop.f32.mrb[0].mxu0
            %v728 = vpop.f32.mrb[0].mxu0
            %v729 = vpop.f32.mrb[0].mxu0
            %730 = vdwg.mxu0
            %v731 = vld [vmem:[%s452] sm:$0xff]
            %v732 = vadd.f32 %v726, %v731
            %v733 = vld [vmem:[%s378] sm:$0xff]
            %v734 = vld [vmem:[%s378 + $0x8] sm:$0xff]
            %vm735 = vcmp.gt.f32.partialorder %v733, 0.0
            %vm736 = vcmp.gt.f32.partialorder %v734, 0.0
            %v737 = vsel %vm735, 1, 0
            %v738 = vsel %vm736, 1, 0
            %739 = vset.pattern.permute.xlu0 0
            %740 = vperm.xlu0 %739, %v737
            %v741 = vpop.permute.xlu0 %740
            %742 = vset.pattern.permute.xlu0 0
            %743 = vperm.xlu0 %742, %v738
            %v744 = vpop.permute.xlu0 %743
            %vm745 = vcmp.eq.s32.totalorder %v741, 1
            %vm746 = vcmp.eq.s32.totalorder %v744, 1
            %v747 = vsel %vm745, %v732, -3e+38
            %v748 = vsel %vm746, %v732, -3e+38
            %v749 = vld [vmem:[#allocation6] sm:$0x3]
            %vm750 = vcmask 64512
            %v751 = vsel %vm750, %v747, -inf
            %v752 = vrot.slane %v751, 4
            %v753 = vmax.f32 %v751, %v752
            %v754 = vrot.slane %v753, 2
            %v755 = vmax.f32 %v753, %v754
            %v756 = vrot.slane %v755, 1
            %v757 = vmax.f32 %v755, %v756
            %v758 = vsel %vm750, %v748, -inf
            %v759 = vrot.slane %v758, 4
            %v760 = vmax.f32 %v758, %v759
            %v761 = vrot.slane %v760, 2
            %v762 = vmax.f32 %v760, %v761
            %v763 = vrot.slane %v762, 1
            %v764 = vmax.f32 %v762, %v763
            %vm767 = vcmask 1041409
            %v768 = vsel %vm767, %v764, %v757
            %v770 = vmax.f32 %v749, %v768
            %vm771 = vcmask 58368
            %772 = vst.msk [vmem:[#allocation6] sm:$0x3] %vm771, %v770
          $region118: #{tpu_custom_call.1} parent=109 // pred_fallthru
            _
        $region110: #{tpu_custom_call.1} parent=85 // pred_fallthru
          _
        // Predicated region
        $region119: #{tpu_custom_call.1} parent=85 // pred_check
          %p773 = pneg %p252
        $region120: #{tpu_custom_call.1} parent=85 // pred_check_branch
          %775 = sbr.rel (%p773) target = $region122
        $region121: #{tpu_custom_call.1} parent=85 // pred_region
          %s777 = ssub.s32 32, 32
          %778 = vsyncadd [#allocation7], %s777
          %s780 = sshll.u32 [#allocation6], 4
          %s781 = int_to_ptr.vmem [resolvable:$true] %s780
          %783 = dma.vmem_to_hbm [thread:$0]  %s781, 32, %s8, [#allocation7]
        $region122: #{tpu_custom_call.1} parent=85 // pred_fallthru
          _
        // Predicated region
        $region123: #{tpu_custom_call.1} parent=85 // pred_check
          %p784 = pneg %p252
        $region124: #{tpu_custom_call.1} parent=85 // pred_check_branch
          %786 = sbr.rel (%p784) target = $region126
        $region125: #{tpu_custom_call.1} parent=85 // pred_region
          %787 = dma.done [#allocation7], 32
        $region126: #{tpu_custom_call.1} parent=85 // pred_fallthru
          _
      $region86: #{tpu_custom_call.1} parent=5 // pred_fallthru
        _
      %p788 = scmp.le.s32.totalorder 2, %s15
      // Predicated region
      $region127: #{tpu_custom_call.1} parent=5 // pred_check
        %p789 = pneg %p788
      $region128: #{tpu_custom_call.1} parent=5 // pred_check_branch
        %791 = sbr.rel (%p789) target = $region130
      $region129: #{tpu_custom_call.1} parent=5 // pred_region
        %s792 = ssub.s32 %s15, 2
      $region130: #{tpu_custom_call.1} parent=5 // pred_fallthru
        _
    $region6: #{tpu_custom_call.1} parent=1 // loop_footer
      %s19 = sadd.s32 1, %s15
    $region7: #{tpu_custom_call.1} parent=1 // loop_footer_branch
      %14 = sbr.rel target = $region3
    $region8: #{tpu_custom_call.1} parent=1 // loop_exit
      _
    %793 = vsyncpa [#allocation7], 1
    %s794 = scalar_lea.sflag [#allocation7], 1
    %795 = vsyncpa %s794, 1

</llo_original>
